<compile_context>
chip_gen: v5e
topology: v5e:2x2
jax: 0.10.0
libtpu: 0.0.40
codegen_flags: <defaults>
</compile_context>

<pallas_src>
import functools

import jax
import jax.numpy as jnp
from jax import lax
from jax.experimental import pallas as pl
from jax.experimental.pallas import tpu as pltpu

BN_EPS = 1e-5
SUBLANE = 8      # f32 sublane rows

# MXU-input dtype.  f32 accumulation is requested via preferred_element_type.
MATMUL_DTYPE = jnp.bfloat16


def _round_up(v, m):
    return (v + m - 1) // m * m


def prepare_params(w1_t, w2_t, gamma, beta):
    """One-time parameter prep (hoisted out of the per-call path).

    w1_t: (C, 2C) linear1 weight transposed; w2_t: (2C, C) linear2 weight
    transposed; gamma/beta: (1, 2C) BatchNorm affine params.
    Returns (w1 bf16, w2 bf16, gb f32 of shape (2, 2C)).
    """
    w1 = w1_t.astype(MATMUL_DTYPE)
    w2 = w2_t.astype(MATMUL_DTYPE)
    gb = jnp.concatenate([gamma, beta], axis=0).astype(jnp.float32)   # (2, 2C)
    return w1, w2, gb


def sandglass_kernel(n_actual, x_ref, w1_ref, w2_ref, gb_ref, o_ref):
    """Fused linear1 -> BN(train) -> ReLU -> linear2 -> 1+tanh.

    `n_actual` is the true batch size (static Python int); zero-padded rows
    beyond it contribute 0 to the mean sum and are masked out of the
    variance pass.  (Shapes already force a retrace per distinct N, so the
    static bake-in adds no extra recompiles.)
    """
    x = x_ref[...]                                   # (Np, C)   MATMUL_DTYPE
    w1 = w1_ref[...]                                 # (C, 2C)   MATMUL_DTYPE
    w2 = w2_ref[...]                                 # (2C, C)   MATMUL_DTYPE
    gb = gb_ref[...]                                 # (2, 2C)   f32
    gamma = gb[0:1, :]
    beta = gb[1:2, :]

    inv_n = 1.0 / n_actual                           # static python float

    # ---- linear1 (no bias): MXU, f32 accumulation --------------------------
    h = jnp.dot(x, w1, preferred_element_type=jnp.float32)        # (Np, 2C)

    # ---- BatchNorm1d (training): two-pass biased stats ----------------------
    mean = jnp.sum(h, axis=0, keepdims=True) * inv_n              # (1, 2C)
    centered = h - mean
    if h.shape[0] != n_actual:
        # Padded rows have h == 0 (zero x rows, no bias) -> mean sum is exact,
        # but (0 - mean) must not leak into the variance.
        rows = lax.broadcasted_iota(jnp.int32, h.shape, 0)
        centered = jnp.where(rows < n_actual, centered, 0.0)
    var = jnp.sum(centered * centered, axis=0, keepdims=True) * inv_n
    scale = gamma * lax.rsqrt(var + BN_EPS)                       # (1, 2C)
    shift = beta - mean * scale                                   # (1, 2C)

    # ---- fused BN affine + ReLU (one FMA + one max per element) ------------
    h_act = jnp.maximum(h * scale + shift, 0.0)                   # (Np, 2C)

    # ---- linear2 (no bias): MXU, f32 accumulation ---------------------------
    out = jnp.dot(h_act.astype(w2.dtype), w2,
                  preferred_element_type=jnp.float32)             # (Np, C)

    # ---- 1 + tanh (EUP) ------------------------------------------------------
    o_ref[...] = 1.0 + jnp.tanh(out)


def sandglass_block(x, w1, w2, gb):
    """x: (N, C) f32; w1 (C, 2C), w2 (2C, C), gb (2, 2C) from prepare_params.

    Returns (N, C) f32 — identical semantics to SandGlassBlock.forward in
    training mode.
    """
    N, C = x.shape
    C2 = w1.shape[1]
    assert w1.shape == (C, C2) and w2.shape == (C2, C) and gb.shape == (2, C2)

    Np = _round_up(N, SUBLANE)
    x_m = x.astype(MATMUL_DTYPE)
    if Np != N:
        x_m = jnp.zeros((Np, C), MATMUL_DTYPE).at[:N, :].set(x_m)

    itemsize = jnp.dtype(MATMUL_DTYPE).itemsize
    cost = pl.CostEstimate(
        flops=2 * Np * C * C2 + 2 * Np * C2 * C,
        transcendentals=Np * C + C2,                      # tanh + rsqrt
        bytes_accessed=(Np * C + C * C2 + C2 * C) * itemsize
                       + 2 * C2 * 4 + Np * C * 4,
    )

    vmem = pl.BlockSpec(memory_space=pltpu.MemorySpace.VMEM)
    out_p = pl.pallas_call(
        functools.partial(sandglass_kernel, N),
        out_shape=jax.ShapeDtypeStruct((Np, C), jnp.float32),
        in_specs=[vmem, vmem, vmem, vmem],
        out_specs=vmem,
        cost_estimate=cost,
    )(x_m, w1, w2, gb)

    return out_p if Np == N else out_p[:N, :]


def reference_f32(x, w1_t, w2_t, gamma, beta):
    """Pure-JAX, full-f32, PyTorch-faithful reference (two-pass BN)."""
    h = x @ w1_t
    mean = jnp.mean(h, axis=0, keepdims=True)
    var = jnp.mean((h - mean) ** 2, axis=0, keepdims=True)
    h = (h - mean) * lax.rsqrt(var + BN_EPS) * gamma + beta
    h = jnp.maximum(h, 0.0)
    return 1.0 + jnp.tanh(h @ w2_t)


def reference_matched(x, w1_t, w2_t, gamma, beta):
    """Same math, but with bf16-rounded MXU inputs (matches the kernel)."""
    h = jnp.dot(x.astype(MATMUL_DTYPE), w1_t.astype(MATMUL_DTYPE),
                preferred_element_type=jnp.float32)
    mean = jnp.mean(h, axis=0, keepdims=True)
    var = jnp.mean((h - mean) ** 2, axis=0, keepdims=True)
    scale = gamma * lax.rsqrt(var + BN_EPS)
    shift = beta - mean * scale
    h = jnp.maximum(h * scale + shift, 0.0)
    out = jnp.dot(h.astype(MATMUL_DTYPE), w2_t.astype(MATMUL_DTYPE),
                  preferred_element_type=jnp.float32)
    return 1.0 + jnp.tanh(out)


if __name__ == "__main__":
    key = jax.random.PRNGKey(0)
    N, C = 8, 32                      # batch=8, in_c=32 -> hidden=64

    k_x, k_w1, k_w2 = jax.random.split(key, 3)
    x = jax.random.normal(k_x, (N, C), dtype=jnp.float32)

    # nn.Linear weights are (out, in); stored transposed for the kernel.
    bound1 = 1.0 / (C ** 0.5)
    w1 = jax.random.uniform(k_w1, (2 * C, C), jnp.float32, -bound1, bound1)
    bound2 = 1.0 / ((2 * C) ** 0.5)
    w2 = jax.random.uniform(k_w2, (C, 2 * C), jnp.float32, -bound2, bound2)
    w1_t, w2_t = w1.T, w2.T                       # (C, 2C), (2C, C)
    gamma = jnp.ones((1, 2 * C), jnp.float32)     # BN weight init
    beta = jnp.zeros((1, 2 * C), jnp.float32)     # BN bias init

    # One-time parameter prep (in a real model this is cached across calls).
    w1_p, w2_p, gb = prepare_params(w1_t, w2_t, gamma, beta)

    out = jax.block_until_ready(sandglass_block(x, w1_p, w2_p, gb))
    assert out.shape == (N, C)

    # Tight check vs a reference with identical bf16 MXU-input rounding.
    ref_m = reference_matched(x, w1_t, w2_t, gamma, beta)
    assert jnp.allclose(out, ref_m, atol=1e-4, rtol=1e-4), "mismatch (matched ref)"

    # Loose check vs the full-f32 PyTorch-faithful reference: bf16 MXU inputs
    # shift the result slightly, so the tolerance is loosened deliberately.
    ref_f = reference_f32(x, w1_t, w2_t, gamma, beta)
    assert jnp.allclose(out, ref_f, atol=5e-2, rtol=5e-2), "mismatch (f32 ref)"

    print("KERNEL_OK")
</pallas_src>

<mosaic_0001>
module attributes {stable_mosaic.version = 11 : i64} {
  func.func @sandglass_kernel(%arg0: memref<8x32xbf16, #tpu.memory_space<vmem>>, %arg1: memref<32x64xbf16, #tpu.memory_space<vmem>>, %arg2: memref<64x32xbf16, #tpu.memory_space<vmem>>, %arg3: memref<2x64xf32, #tpu.memory_space<vmem>>, %arg4: memref<8x32xf32, #tpu.memory_space<vmem>>) attributes {dimension_semantics = [], scalar_prefetch = 0 : i64, scratch_operands = 0 : i64, tpu.core_type = #tpu.core_type<tc>} {
    %c0 = arith.constant 0 : index
    %c0_0 = arith.constant 0 : index
    %0 = vector.load %arg0[%c0, %c0_0] : memref<8x32xbf16, #tpu.memory_space<vmem>>, vector<8x32xbf16>
    %c0_1 = arith.constant 0 : index
    %c0_2 = arith.constant 0 : index
    %1 = vector.load %arg1[%c0_1, %c0_2] : memref<32x64xbf16, #tpu.memory_space<vmem>>, vector<32x64xbf16>
    %c0_3 = arith.constant 0 : index
    %c0_4 = arith.constant 0 : index
    %2 = vector.load %arg2[%c0_3, %c0_4] : memref<64x32xbf16, #tpu.memory_space<vmem>>, vector<64x32xbf16>
    %c0_5 = arith.constant 0 : index
    %c0_6 = arith.constant 0 : index
    %3 = vector.load %arg3[%c0_5, %c0_6] : memref<2x64xf32, #tpu.memory_space<vmem>>, vector<2x64xf32>
    %4 = vector.extract_strided_slice %3 {offsets = [0, 0], sizes = [1, 64], strides = [1, 1]} : vector<2x64xf32> to vector<1x64xf32>
    %5 = vector.extract_strided_slice %3 {offsets = [1, 0], sizes = [1, 64], strides = [1, 1]} : vector<2x64xf32> to vector<1x64xf32>
    %cst = arith.constant dense<0.000000e+00> : vector<8x64xf32>
    %6 = tpu.matmul %0, %1, %cst {dimension_numbers = #tpu.dot_dimension_numbers<[1], [0], [0], [1], [0, 0, 1, 1], [], []>} : vector<8x32xbf16>, vector<32x64xbf16>, vector<8x64xf32> -> vector<8x64xf32>
    %cst_7 = arith.constant dense<0.000000e+00> : vector<64xf32>
    %7 = vector.multi_reduction <add>, %6, %cst_7 [0] : vector<8x64xf32> to vector<64xf32>
    %8 = vector.shape_cast %7 : vector<64xf32> to vector<1x64xf32>
    %cst_8 = arith.constant 1.250000e-01 : f32
    %9 = vector.broadcast %cst_8 : f32 to vector<1x64xf32>
    %10 = arith.mulf %8, %9 : vector<1x64xf32>
    %11 = vector.broadcast %10 : vector<1x64xf32> to vector<8x64xf32>
    %12 = arith.subf %6, %11 : vector<8x64xf32>
    %13 = arith.mulf %12, %12 : vector<8x64xf32>
    %cst_9 = arith.constant dense<0.000000e+00> : vector<64xf32>
    %14 = vector.multi_reduction <add>, %13, %cst_9 [0] : vector<8x64xf32> to vector<64xf32>
    %15 = vector.shape_cast %14 : vector<64xf32> to vector<1x64xf32>
    %cst_10 = arith.constant 1.250000e-01 : f32
    %16 = vector.broadcast %cst_10 : f32 to vector<1x64xf32>
    %17 = arith.mulf %15, %16 : vector<1x64xf32>
    %cst_11 = arith.constant 9.99999974E-6 : f32
    %18 = vector.broadcast %cst_11 : f32 to vector<1x64xf32>
    %19 = arith.addf %17, %18 : vector<1x64xf32>
    %20 = math.rsqrt %19 : vector<1x64xf32>
    %21 = arith.mulf %4, %20 : vector<1x64xf32>
    %22 = arith.mulf %10, %21 : vector<1x64xf32>
    %23 = arith.subf %5, %22 : vector<1x64xf32>
    %24 = vector.broadcast %21 : vector<1x64xf32> to vector<8x64xf32>
    %25 = arith.mulf %6, %24 : vector<8x64xf32>
    %26 = vector.broadcast %23 : vector<1x64xf32> to vector<8x64xf32>
    %27 = arith.addf %25, %26 : vector<8x64xf32>
    %cst_12 = arith.constant 0.000000e+00 : f32
    %28 = vector.broadcast %cst_12 : f32 to vector<8x64xf32>
    %29 = arith.maximumf %27, %28 : vector<8x64xf32>
    %30 = arith.truncf %29 : vector<8x64xf32> to vector<8x64xbf16>
    %cst_13 = arith.constant dense<0.000000e+00> : vector<8x32xf32>
    %31 = tpu.matmul %30, %2, %cst_13 {dimension_numbers = #tpu.dot_dimension_numbers<[1], [0], [0], [1], [0, 0, 1, 1], [], []>} : vector<8x64xbf16>, vector<64x32xbf16>, vector<8x32xf32> -> vector<8x32xf32>
    %32 = math.tanh %31 : vector<8x32xf32>
    %cst_14 = arith.constant 1.000000e+00 : f32
    %33 = vector.broadcast %cst_14 : f32 to vector<8x32xf32>
    %34 = arith.addf %33, %32 : vector<8x32xf32>
    %c0_15 = arith.constant 0 : index
    %c0_16 = arith.constant 0 : index
    %35 = vector.load %arg4[%c0_15, %c0_16] : memref<8x32xf32, #tpu.memory_space<vmem>>, vector<8x32xf32>
    tpu.vector_store %arg4[%c0_15, %c0_16], %34 {strides = array<i32>} : memref<8x32xf32, #tpu.memory_space<vmem>>, vector<8x32xf32>,
    return
  }
}

</mosaic_0001>

<llo_original>
// kernel: tpu_custom_call.1
$region0: #{tpu_custom_call.1}
  #allocation0 [shape = 'u32[]', space=smem, size = 0x4, offset = 0x4, fixed_abs, tag = 'smem constant byte address 0x4 - core index']
  #allocation1 [shape = 'u32[72,128]{1,0:T(1,128)}', space=vmem, size = 0x9000, scoped, tag = 'internal scratch']
  %s0 = inlined_call_operand.vmem [shape: bf16[8,32], index: 0, kind: input, shape index: {}]
  %s1 = inlined_call_operand.vmem [shape: bf16[32,64], index: 1, kind: input, shape index: {}]
  %s2 = inlined_call_operand.vmem [shape: bf16[64,32], index: 2, kind: input, shape index: {}]
  %s3 = inlined_call_operand.vmem [shape: f32[2,64], index: 3, kind: input, shape index: {}]
  %s4 = inlined_call_operand.hbm [shape: f32[8,32], index: 4, kind: output, shape index: {}]
  %s5 = sld [smem:[#allocation0]]
  $region26: #{tpu_custom_call.1} parent=0
    _
  %s7 = ssub.s32 1, %s5
  %s8 = scalar_select 0, %s7, %s5
  $region1: #{tpu_custom_call.1} parent=0
    #allocation2 [shape = 'u8[4096]{0}', space=vmem, size = 0x1000, scoped, tag = 'output window, operand 0, single buffered']
    #allocation3 [shape = 's32[1]{0}', space=sflag, size = 0x4, scoped, tag = 'scoped memory for tpu_custom_call.1']
    %9 = vsyncpa [#allocation3], 0
    // Predicated region
    $region2: #{tpu_custom_call.1} parent=1 // pred_check
      _
    $region3: #{tpu_custom_call.1} parent=1 // pred_check_branch
      %11 = sbr.rel (0) target = $region5
    $region4: #{tpu_custom_call.1} parent=1 // pred_region
      _
    $region5: #{tpu_custom_call.1} parent=1 // pred_fallthru
      _
    // Predicated region
    $region6: #{tpu_custom_call.1} parent=1 // pred_check
      _
    $region7: #{tpu_custom_call.1} parent=1 // pred_check_branch
      %13 = sbr.rel (0) target = $region9
    $region8: #{tpu_custom_call.1} parent=1 // pred_region
      _
    $region9: #{tpu_custom_call.1} parent=1 // pred_fallthru
      _
    // Predicated region
    $region10: #{tpu_custom_call.1} parent=1 // pred_check
      _
    $region11: #{tpu_custom_call.1} parent=1 // pred_check_branch
      %15 = sbr.rel (0) target = $region13
    $region12: #{tpu_custom_call.1} parent=1 // pred_region
      _
    $region13: #{tpu_custom_call.1} parent=1 // pred_fallthru
      _
    // Predicated region
    $region14: #{tpu_custom_call.1} parent=1 // pred_check
      _
    $region15: #{tpu_custom_call.1} parent=1 // pred_check_branch
      %17 = sbr.rel (0) target = $region17
    $region16: #{tpu_custom_call.1} parent=1 // pred_region
      _
    $region17: #{tpu_custom_call.1} parent=1 // pred_fallthru
      _
    %v19 = vld [vmem:[%s0] sm:$0xf]
    %v20 = vld [vmem:[%s1] sm:$0xf]
    %v21 = vld [vmem:[%s1 + $0x4] sm:$0xf]
    %v22 = vld [vmem:[%s1 + $0x8] sm:$0xf]
    %v23 = vld [vmem:[%s1 + $0xc] sm:$0xf]
    %v24 = vld [vmem:[%s2] sm:$0xf]
    %v25 = vld [vmem:[%s2 + $0x4] sm:$0xf]
    %v26 = vld [vmem:[%s2 + $0x8] sm:$0xf]
    %v27 = vld [vmem:[%s2 + $0xc] sm:$0xf]
    %v28 = vld [vmem:[%s2 + $0x10] sm:$0xf]
    %v29 = vld [vmem:[%s2 + $0x14] sm:$0xf]
    %v30 = vld [vmem:[%s2 + $0x18] sm:$0xf]
    %v31 = vld [vmem:[%s2 + $0x1c] sm:$0xf]
    %v32 = vld [vmem:[%s3] sm:$0x3]
    %v37 = vunpack.c.l.b16 %v20
    %v38 = vunpack.c.l.b16 %v21
    %v39 = vunpack.c.l.b16 %v22
    %v40 = vunpack.c.l.b16 %v23
    %v41 = vpack.c.b16 %v38, %v37
    %v42 = vpack.c.b16 %v40, %v39
    %vm45 = vcmask 261120
    %v47 = vsel %vm45, %v19, 0
    %49 = vmatpush.bf16.msra.mxu0 0
    %50 = vmatpush.bf16.msra.mxu0 0
    %51 = vmatpush.bf16.msra.mxu0 0
    %52 = vmatpush.bf16.msra.mxu0 0
    %53 = vmatpush.bf16.msra.mxu0 0
    %54 = vmatpush.bf16.msra.mxu0 0
    %55 = vmatpush.bf16.msra.mxu0 %v42
    %56 = vmatpush.bf16.msra.mxu0 %v41
    %57 = vmatmul.bf16.gmra.mxu0 %v47
    %v58 = vpop.f32.mrf.mxu0
    %v59 = vadd.f32 0.0, %v58
    %v60 = vpop.f32.mrf.mxu0
    %61 = vdwg.mxu0
    %vm62 = vcmask 523264
    %v63 = vsel %vm62, %v59, 0.0
    %v64 = vrot.slane %v63, 4
    %v65 = vadd.f32 %v63, %v64
    %v66 = vrot.slane %v65, 2
    %v67 = vadd.f32 %v65, %v66
    %v68 = vrot.slane %v67, 1
    %v69 = vadd.f32 %v67, %v68
    %v70 = vmul.f32 %v69, 0.125
    %v71 = vsub.f32 %v59, %v70
    %v72 = vmul.f32 %v71, %v71
    %v73 = vsel %vm62, %v72, 0.0
    %v74 = vrot.slane %v73, 4
    %v75 = vadd.f32 %v73, %v74
    %v76 = vrot.slane %v75, 2
    %v77 = vadd.f32 %v75, %v76
    %v78 = vrot.slane %v77, 1
    %v79 = vadd.f32 %v77, %v78
    %v80 = vmul.f32 %v79, 0.125
    %v81 = vadd.f32 %v80, 1e-05
    %v82 = vrsqrt.pop %v81
    %v83 = vmul.f32 %v82, %v81
    %v84 = vmul.f32 %v83, %v82
    %v85 = vmul.f32 0.5, %v84
    %v86 = vsub.f32 1.5, %v85
    %v87 = vmul.f32 %v82, %v86
    %vm88 = vweird.f32 %v81
    %vm89 = vweird.f32 %v82
    %vm90 = vmor %vm88, %vm89
    %v91 = vsel %vm90, %v82, %v87
    %v92 = vmul.f32 %v32, %v91
    %v93 = vmul.f32 %v70, %v92
    %v95 = vrot.slane %v93, 7
    %v97 = vsub.f32 %v32, %v95
    %v98 = vperm.slane %v92, 0
    %v99 = vmul.f32 %v59, %v98
    %v100 = vperm.slane %v97, 1
    %v101 = vadd.f32 %v99, %v100
    %v102 = vmax.f32 %v101, 0.0
    %v103 = vpack.c.bf16 %v102, %v102
    %v112 = vunpack.c.l.b16 %v24
    %v113 = vunpack.c.l.b16 %v25
    %v114 = vunpack.c.l.b16 %v26
    %v115 = vunpack.c.l.b16 %v27
    %v116 = vunpack.c.l.b16 %v28
    %v117 = vunpack.c.l.b16 %v29
    %v118 = vunpack.c.l.b16 %v30
    %v119 = vunpack.c.l.b16 %v31
    %v120 = vpack.c.b16 %v113, %v112
    %v121 = vpack.c.b16 %v115, %v114
    %v122 = vpack.c.b16 %v117, %v116
    %v123 = vpack.c.b16 %v119, %v118
    %v129 = vsel %vm62, %v103, 0
    %131 = vmatpush.bf16.msra.mxu0 0
    %132 = vmatpush.bf16.msra.mxu0 0
    %133 = vmatpush.bf16.msra.mxu0 0
    %134 = vmatpush.bf16.msra.mxu0 0
    %135 = vmatpush.bf16.msra.mxu0 %v123
    %136 = vmatpush.bf16.msra.mxu0 %v122
    %137 = vmatpush.bf16.msra.mxu0 %v121
    %138 = vmatpush.bf16.msra.mxu0 %v120
    %139 = vmatmul.bf16.gmra.mxu0 %v129
    %v140 = vpop.f32.mrf.mxu0
    %v141 = vadd.f32 0.0, %v140
    %v142 = vpop.f32.mrf.mxu0
    %143 = vdwg.mxu0
    %v144 = vtanh.pop %v141
    %v145 = vadd.f32 %v144, 1.0
    %146 = vst.msk [vmem:[#allocation2] sm:$0xff] %vm45, %v145
    // Predicated region
    $region18: #{tpu_custom_call.1} parent=1 // pred_check
      _
    $region19: #{tpu_custom_call.1} parent=1 // pred_check_branch
      %148 = sbr.rel (0) target = $region21
    $region20: #{tpu_custom_call.1} parent=1 // pred_region
      %150 = vsyncadd [#allocation3], 0
      %s152 = sshll.u32 [#allocation2], 4
      %s153 = int_to_ptr.vmem [resolvable:$true] %s152
      %s154 = sshll.u32 %s4, 4
      %s155 = int_to_ptr.hbm [resolvable:$true] %s154
      %157 = dma.vmem_to_hbm [thread:$0]  %s153, 128, %s155, [#allocation3]
    $region21: #{tpu_custom_call.1} parent=1 // pred_fallthru
      _
    // Predicated region
    $region22: #{tpu_custom_call.1} parent=1 // pred_check
      _
    $region23: #{tpu_custom_call.1} parent=1 // pred_check_branch
      %159 = sbr.rel (0) target = $region25
    $region24: #{tpu_custom_call.1} parent=1 // pred_region
      %161 = dma.done [#allocation3], 128
    $region25: #{tpu_custom_call.1} parent=1 // pred_fallthru
      _
    %162 = vsyncpa [#allocation3], 1

</llo_original>
